<compile_context>
chip_gen: v5e
topology: v5e:2x2
jax: 0.10.0
libtpu: 0.0.40
codegen_flags: <defaults>
</compile_context>

<pallas_src>
import jax
import jax.numpy as jnp
from jax.experimental import pallas as pl
from jax.experimental.pallas import tpu as pltpu


# ----------------------------- Pallas kernel --------------------------------
def _fused_1x1_kernel(x_ref, we_ref, be_ref, ws_ref, bs_ref, o_ref):
    """Fused encoder (1x1 conv + ReLU) + segmenter (1x1 conv).

    x_ref : (Cin,  T)    input pixels, spatial axis on lanes
    we_ref: (Cenc, Cin)  encoder weight      be_ref: (Cenc, 1) encoder bias
    ws_ref: (Cout, Cenc) segmenter weight    bs_ref: (Cout, 1) segmenter bias
    o_ref : (Cout, T)
    """
    x = x_ref[...]
    h = jnp.dot(we_ref[...], x, preferred_element_type=jnp.float32) + be_ref[...]
    h = jnp.maximum(h, 0.0)                     # ReLU; intermediate stays on-chip
    y = jnp.dot(ws_ref[...], h, preferred_element_type=jnp.float32) + bs_ref[...]
    o_ref[...] = y.astype(o_ref.dtype)


def _round_up(x, m):
    return (x + m - 1) // m * m


def fused_pointwise_encoder_segmenter(x_nchw, params, *, max_spatial_tile=64 * 1024):
    """relu(conv1x1_enc(x)) -> conv1x1_seg, fused in one Pallas kernel.

    Input NCHW; returns (N, Cout, H*W) with the spatial axis flattened (lane
    dense); the caller reshapes (free) / applies the pad-crop shift.
    """
    n, cin, h, w = x_nchw.shape
    s = h * w
    we, be = params["enc_w"], params["enc_b"]
    ws, bs = params["seg_w"], params["seg_b"]
    cenc, cout = we.shape[0], ws.shape[0]

    # Channel-major, spatial flattened onto the lane axis (contiguous, no transpose).
    x = x_nchw.reshape(n, cin, s)

    # ---- spatial tiling (no host-side padding; Pallas masks the ragged tail) ----
    max_tiles = max(pl.cdiv(s, 128), 1)                  # finest useful granularity
    min_tiles = 2 if (n == 1 and max_tiles >= 2) else 1  # keep both v7x TCs busy
    num_tiles = min(max(pl.cdiv(s, max_spatial_tile), min_tiles), max_tiles)
    tile = _round_up(pl.cdiv(s, num_tiles), 128)         # lane-dense tiles
    num_tiles = pl.cdiv(s, tile)

    grid = (n, num_tiles)

    cost = pl.CostEstimate(
        flops=2 * (cin * cenc + cenc * cout) * n * s,
        transcendentals=0,
        bytes_accessed=4 * (cin + cout) * n * s
        + 4 * (cenc * cin + cenc + cout * cenc + cout),
    )

    y = pl.pallas_call(
        _fused_1x1_kernel,
        out_shape=jax.ShapeDtypeStruct((n, cout, s), jnp.float32),
        grid_spec=pl.GridSpec(
            grid=grid,
            in_specs=[
                pl.BlockSpec((None, cin, tile), lambda b, j: (b, 0, j)),
                pl.BlockSpec((cenc, cin), lambda b, j: (0, 0)),
                pl.BlockSpec((cenc, 1), lambda b, j: (0, 0)),
                pl.BlockSpec((cout, cenc), lambda b, j: (0, 0)),
                pl.BlockSpec((cout, 1), lambda b, j: (0, 0)),
            ],
            out_specs=pl.BlockSpec((None, cout, tile), lambda b, j: (b, 0, j)),
        ),
        compiler_params=pltpu.CompilerParams(
            dimension_semantics=("parallel", "parallel"),
            vmem_limit_bytes=32 * 1024 * 1024,
        ),
        cost_estimate=cost,
    )(x, we, be, ws, bs)
    return y  # (N, Cout, H*W)


# ----------------------------- CombinedModel ---------------------------------
def combined_model_forward(x_nchw, params):
    n, _, h, w = x_nchw.shape
    y = fused_pointwise_encoder_segmenter(x_nchw, params)   # (N, Cout, H*W)

    # _pad_input (replicate to mult-of-32) then _crop_output (top-left crop)
    # commutes with the pointwise segmenter and reduces to a static clamped
    # shift of the output by (pad_top, pad_left).
    pad_top = ((32 - h % 32) % 32) // 2
    pad_left = ((32 - w % 32) % 32) // 2
    if pad_top == 0 and pad_left == 0:
        return y.reshape(n, -1, h, w)            # fast path: no extra HBM pass

    # Single flat-index gather (one pass) instead of slice + two takes.
    src_r = jnp.clip(jnp.arange(h) - pad_top, 0, h - 1)
    src_c = jnp.clip(jnp.arange(w) - pad_left, 0, w - 1)
    flat_idx = (src_r[:, None] * w + src_c[None, :]).reshape(-1)
    y = jnp.take(y, flat_idx, axis=2)
    return y.reshape(n, -1, h, w)


def init_params(key, c_in=4, c_enc=8, n_classes=3):
    k1, k2, k3, k4 = jax.random.split(key, 4)
    return {
        # stored PyTorch-style (Cout, Cin); kernel computes W @ pixels + b
        "enc_w": jax.random.normal(k1, (c_enc, c_in), jnp.float32) * 0.1,
        "enc_b": jax.random.normal(k2, (c_enc, 1), jnp.float32) * 0.1,
        "seg_w": jax.random.normal(k3, (n_classes, c_enc), jnp.float32) * 0.1,
        "seg_b": jax.random.normal(k4, (n_classes, 1), jnp.float32) * 0.1,
    }


# ----------------------------- reference (pure jnp) ---------------------------
def _reference_forward(x_nchw, params):
    """Pure-jnp reference mirroring the PyTorch module op-for-op."""
    enc = jnp.einsum("oc,nchw->nohw", params["enc_w"], x_nchw)
    enc = jnp.maximum(enc + params["enc_b"].reshape(1, -1, 1, 1), 0.0)
    _, _, h, w = enc.shape
    pad_h = (32 - h % 32) % 32
    pad_w = (32 - w % 32) % 32
    pads = ((0, 0), (0, 0),
            (pad_h // 2, pad_h - pad_h // 2),
            (pad_w // 2, pad_w - pad_w // 2))
    enc = jnp.pad(enc, pads, mode="edge")        # replicate padding
    seg = jnp.einsum("oc,nchw->nohw", params["seg_w"], enc)
    seg = seg + params["seg_b"].reshape(1, -1, 1, 1)
    return seg[:, :, : x_nchw.shape[2], : x_nchw.shape[3]]


if __name__ == "__main__":
    key = jax.random.PRNGKey(0)
    k_x, k_p = jax.random.split(key)

    # NCHW input: batch=2, channels=4, spatial 16x16 (exercises the shift path)
    x = jax.random.normal(k_x, (2, 4, 16, 16), jnp.float32)
    params = init_params(k_p, c_in=4, c_enc=8, n_classes=3)

    fwd = jax.jit(combined_model_forward)
    out = jax.block_until_ready(fwd(x, params))

    assert out.shape == (2, 3, 16, 16), out.shape
    assert out.dtype == jnp.float32

    ref = _reference_forward(x, params)
    max_err = float(jnp.max(jnp.abs(out - ref)))
    assert jnp.allclose(out, ref, rtol=5e-2, atol=5e-2), max_err

    print("KERNEL_OK")
</pallas_src>

<mosaic_0001>
module attributes {stable_mosaic.version = 11 : i64} {
  func.func @_fused_1x1_kernel(%arg0: i32, %arg1: i32, %arg2: memref<1x4x256xf32, #tpu.memory_space<vmem>>, %arg3: memref<8x4xf32, #tpu.memory_space<vmem>>, %arg4: memref<8x1xf32, #tpu.memory_space<vmem>>, %arg5: memref<3x8xf32, #tpu.memory_space<vmem>>, %arg6: memref<3x1xf32, #tpu.memory_space<vmem>>, %arg7: memref<1x3x256xf32, #tpu.memory_space<vmem>>) attributes {dimension_semantics = [#tpu.dimension_semantics<parallel>, #tpu.dimension_semantics<parallel>], iteration_bounds = array<i64: 2, 1>, scalar_prefetch = 0 : i64, scratch_operands = 0 : i64, tpu.core_type = #tpu.core_type<tc>, window_params = [{transform_indices = @transform_0, window_bounds = array<i64: 1, 4, 256>}, {pipeline_mode = #tpu.pipeline_mode<synchronous>, transform_indices = @transform_1, window_bounds = array<i64: 8, 4>}, {pipeline_mode = #tpu.pipeline_mode<synchronous>, transform_indices = @transform_2, window_bounds = array<i64: 8, 1>}, {pipeline_mode = #tpu.pipeline_mode<synchronous>, transform_indices = @transform_3, window_bounds = array<i64: 3, 8>}, {pipeline_mode = #tpu.pipeline_mode<synchronous>, transform_indices = @transform_4, window_bounds = array<i64: 3, 1>}, {transform_indices = @transform_5, window_bounds = array<i64: 1, 3, 256>}]} {
    %c0 = arith.constant 0 : index
    %c0_0 = arith.constant 0 : index
    %c0_1 = arith.constant 0 : index
    %0 = vector.load %arg2[%c0, %c0_0, %c0_1] : memref<1x4x256xf32, #tpu.memory_space<vmem>>, vector<1x4x256xf32>
    %1 = vector.shape_cast %0 : vector<1x4x256xf32> to vector<4x256xf32>
    %c0_2 = arith.constant 0 : index
    %c0_3 = arith.constant 0 : index
    %2 = vector.load %arg3[%c0_2, %c0_3] : memref<8x4xf32, #tpu.memory_space<vmem>>, vector<8x4xf32>
    %cst = arith.constant dense<0.000000e+00> : vector<8x256xf32>
    %3 = tpu.matmul %2, %1, %cst {dimension_numbers = #tpu.dot_dimension_numbers<[1], [0], [0], [1], [0, 0, 1, 1], [], []>} : vector<8x4xf32>, vector<4x256xf32>, vector<8x256xf32> -> vector<8x256xf32>
    %c0_4 = arith.constant 0 : index
    %c0_5 = arith.constant 0 : index
    %4 = vector.load %arg4[%c0_4, %c0_5] : memref<8x1xf32, #tpu.memory_space<vmem>>, vector<8x1xf32>
    %5 = vector.broadcast %4 : vector<8x1xf32> to vector<8x256xf32>
    %6 = arith.addf %3, %5 : vector<8x256xf32>
    %cst_6 = arith.constant 0.000000e+00 : f32
    %7 = vector.broadcast %cst_6 : f32 to vector<8x256xf32>
    %8 = arith.maximumf %6, %7 : vector<8x256xf32>
    %c0_7 = arith.constant 0 : index
    %c0_8 = arith.constant 0 : index
    %9 = vector.load %arg5[%c0_7, %c0_8] : memref<3x8xf32, #tpu.memory_space<vmem>>, vector<3x8xf32>
    %cst_9 = arith.constant dense<0.000000e+00> : vector<3x256xf32>
    %10 = tpu.matmul %9, %8, %cst_9 {dimension_numbers = #tpu.dot_dimension_numbers<[1], [0], [0], [1], [0, 0, 1, 1], [], []>} : vector<3x8xf32>, vector<8x256xf32>, vector<3x256xf32> -> vector<3x256xf32>
    %c0_10 = arith.constant 0 : index
    %c0_11 = arith.constant 0 : index
    %11 = vector.load %arg6[%c0_10, %c0_11] : memref<3x1xf32, #tpu.memory_space<vmem>>, vector<3x1xf32>
    %12 = vector.broadcast %11 : vector<3x1xf32> to vector<3x256xf32>
    %13 = arith.addf %10, %12 : vector<3x256xf32>
    %c0_12 = arith.constant 0 : index
    %c0_13 = arith.constant 0 : index
    %c0_14 = arith.constant 0 : index
    %14 = vector.load %arg7[%c0_12, %c0_13, %c0_14] : memref<1x3x256xf32, #tpu.memory_space<vmem>>, vector<1x3x256xf32>
    %15 = vector.shape_cast %14 : vector<1x3x256xf32> to vector<3x256xf32>
    %16 = vector.shape_cast %13 : vector<3x256xf32> to vector<1x3x256xf32>
    tpu.vector_store %arg7[%c0_12, %c0_13, %c0_14], %16 {strides = array<i32>} : memref<1x3x256xf32, #tpu.memory_space<vmem>>, vector<1x3x256xf32>,
    return
  }
  func.func @transform_0(%arg0: i32, %arg1: i32) -> (i32, i32, i32) {
    %c0_i32 = arith.constant 0 : i32
    %c0_i32_0 = arith.constant 0 : i32
    return %arg0, %c0_i32, %arg1 : i32, i32, i32
  }
  func.func @transform_1(%arg0: i32, %arg1: i32) -> (i32, i32) {
    %c0_i32 = arith.constant 0 : i32
    %c0_i32_0 = arith.constant 0 : i32
    %c0_i32_1 = arith.constant 0 : i32
    return %c0_i32, %c0_i32_0 : i32, i32
  }
  func.func @transform_2(%arg0: i32, %arg1: i32) -> (i32, i32) {
    %c0_i32 = arith.constant 0 : i32
    %c0_i32_0 = arith.constant 0 : i32
    %c0_i32_1 = arith.constant 0 : i32
    return %c0_i32, %c0_i32_0 : i32, i32
  }
  func.func @transform_3(%arg0: i32, %arg1: i32) -> (i32, i32) {
    %c0_i32 = arith.constant 0 : i32
    %c0_i32_0 = arith.constant 0 : i32
    %c0_i32_1 = arith.constant 0 : i32
    return %c0_i32, %c0_i32_0 : i32, i32
  }
  func.func @transform_4(%arg0: i32, %arg1: i32) -> (i32, i32) {
    %c0_i32 = arith.constant 0 : i32
    %c0_i32_0 = arith.constant 0 : i32
    %c0_i32_1 = arith.constant 0 : i32
    return %c0_i32, %c0_i32_0 : i32, i32
  }
  func.func @transform_5(%arg0: i32, %arg1: i32) -> (i32, i32, i32) {
    %c0_i32 = arith.constant 0 : i32
    %c0_i32_0 = arith.constant 0 : i32
    return %arg0, %c0_i32, %arg1 : i32, i32, i32
  }
}

</mosaic_0001>

<llo_original>
// kernel: combined_model_forward.1
$region0: #{combined_model_forward.1}
  #allocation0 [shape = 'u32[]', space=smem, size = 0x4, offset = 0x4, fixed_abs, tag = 'smem constant byte address 0x4 - core index']
  #allocation1 [shape = 'u32[72,128]{1,0:T(1,128)}', space=vmem, size = 0x9000, scoped, tag = 'internal scratch']
  %s0 = inlined_call_operand.vmem [shape: f32[2,4,256], index: 0, kind: input, shape index: {}]
  %s1 = inlined_call_operand.vmem [shape: f32[8,4], index: 1, kind: input, shape index: {}]
  %s2 = inlined_call_operand.vmem [shape: f32[8,1], index: 2, kind: input, shape index: {}]
  %s3 = inlined_call_operand.vmem [shape: f32[3,8], index: 3, kind: input, shape index: {}]
  %s4 = inlined_call_operand.vmem [shape: f32[3,1], index: 4, kind: input, shape index: {}]
  %s5 = inlined_call_operand.vmem [shape: f32[2,3,256], index: 5, kind: output, shape index: {}]
  %s6 = sld [smem:[#allocation0]]
  $region53: #{combined_model_forward.1} parent=0
    _
  %s8 = ssub.s32 1, %s6
  %s9 = scalar_select 0, %s8, %s6
  loop: start=0, step=1, limit=4
  $region2: #{combined_model_forward.1} parent=0 // loop_pre_header
    _
  $region3: #{combined_model_forward.1} parent=0 // loop_header
    %s11 = sphi 0, %s15
    %p12 = scmp.ge.s32.totalorder %s11, 4
    %s18 = sphi 0, %s30
    %s19 = sphi 0, %s26
    %s20 = sphi 0, %s18
    %s21 = sphi 0, %s19
    %s22 = sphi 0, %s20
    %s23 = sphi 0, %s21
    %s35 = sphi 0, %s37
    %s38 = sphi 0, %s35
    %s39 = sphi 0, %s38
    %s55 = sphi 0, %s39
    %s59 = sphi 0, %s59
    %s61 = sphi 0, %s59
    %s62 = sphi 0, %s61
    %s76 = sphi 0, %s62
    %s80 = sphi 0, %s80
    %s82 = sphi 0, %s80
    %s83 = sphi 0, %s82
    %s97 = sphi 0, %s83
    %s101 = sphi 0, %s101
    %s103 = sphi 0, %s101
    %s104 = sphi 0, %s103
    %s118 = sphi 0, %s104
    %s122 = sphi 0, %s122
    %s124 = sphi 0, %s122
    %s125 = sphi 0, %s124
    %s139 = sphi 0, %s125
    %s147 = sphi 0, %s149
    %s150 = sphi 0, %s147
    %s151 = sphi 0, %s150
    %s167 = sphi 0, %s151
  $region4: #{combined_model_forward.1} parent=0 // loop_header_branch
    %14 = sbr.rel (%p12) target = $region8
  $region5: #{combined_model_forward.1} parent=0 // loop_body
    %s16 = ssub.s32 %s11, 1
    %s17 = ssub.s32 %s11, 2
    %s24 = sadd.s32 1, %s19
    %p25 = scmp.ge.s32.totalorder %s24, 1
    %s26 = scalar_select %p25, 0, %s24
    %s27 = sadd.s32 1, %s18
    %s28 = scalar_select %p25, %s27, %s18
    %p29 = scmp.ge.s32.totalorder %s28, 2
    %s30 = scalar_select %p29, 0, %s28
    %s31 = ssub.s32 %s18, %s30
    %s32 = ssub.s32 %s19, %s26
    %s33 = sor.u32 %s31, %s32
    %p34 = scmp.eq.s32.totalorder %s33, 0
    %s36 = sadd.s32 %s35, 1
    %s37 = scalar_select %p34, %s35, %s36
    %p40 = pneg %p34
    %p41 = scmp.eq.s32.totalorder %s11, 1
    %p42 = por %p40, %p41
    %p43 = scmp.ne.s32.totalorder %s35, %s38
    %p44 = scmp.eq.s32.totalorder %s11, 0
    %p45 = por %p43, %p44
    %p46 = scmp.ne.s32.totalorder %s35, %s38
    %p47 = scmp.eq.s32.totalorder %s16, 1
    %p48 = por %p46, %p47
    %p49 = scmp.ne.s32.totalorder %s38, %s39
    %p50 = scmp.eq.s32.totalorder %s16, 0
    %p51 = por %p49, %p50
    %p52 = scmp.ne.s32.totalorder %s38, %s39
    %p53 = scmp.eq.s32.totalorder %s17, 1
    %p54 = por %p52, %p53
    %p56 = scmp.ne.s32.totalorder %s39, %s55
    %p57 = scmp.eq.s32.totalorder %s17, 0
    %p58 = por %p56, %p57
    %s60 = sadd.s32 %s59, 1
    %p63 = scmp.eq.s32.totalorder %s11, 1
    %p64 = scmp.ne.s32.totalorder %s59, %s61
    %p65 = scmp.eq.s32.totalorder %s11, 0
    %p66 = por %p64, %p65
    %p67 = scmp.ne.s32.totalorder %s59, %s61
    %p68 = scmp.eq.s32.totalorder %s16, 1
    %p69 = por %p67, %p68
    %p70 = scmp.ne.s32.totalorder %s61, %s62
    %p71 = scmp.eq.s32.totalorder %s16, 0
    %p72 = por %p70, %p71
    %p73 = scmp.ne.s32.totalorder %s61, %s62
    %p74 = scmp.eq.s32.totalorder %s17, 1
    %p75 = por %p73, %p74
    %p77 = scmp.ne.s32.totalorder %s62, %s76
    %p78 = scmp.eq.s32.totalorder %s17, 0
    %p79 = por %p77, %p78
    %s81 = sadd.s32 %s80, 1
    %p84 = scmp.eq.s32.totalorder %s11, 1
    %p85 = scmp.ne.s32.totalorder %s80, %s82
    %p86 = scmp.eq.s32.totalorder %s11, 0
    %p87 = por %p85, %p86
    %p88 = scmp.ne.s32.totalorder %s80, %s82
    %p89 = scmp.eq.s32.totalorder %s16, 1
    %p90 = por %p88, %p89
    %p91 = scmp.ne.s32.totalorder %s82, %s83
    %p92 = scmp.eq.s32.totalorder %s16, 0
    %p93 = por %p91, %p92
    %p94 = scmp.ne.s32.totalorder %s82, %s83
    %p95 = scmp.eq.s32.totalorder %s17, 1
    %p96 = por %p94, %p95
    %p98 = scmp.ne.s32.totalorder %s83, %s97
    %p99 = scmp.eq.s32.totalorder %s17, 0
    %p100 = por %p98, %p99
    %s102 = sadd.s32 %s101, 1
    %p105 = scmp.eq.s32.totalorder %s11, 1
    %p106 = scmp.ne.s32.totalorder %s101, %s103
    %p107 = scmp.eq.s32.totalorder %s11, 0
    %p108 = por %p106, %p107
    %p109 = scmp.ne.s32.totalorder %s101, %s103
    %p110 = scmp.eq.s32.totalorder %s16, 1
    %p111 = por %p109, %p110
    %p112 = scmp.ne.s32.totalorder %s103, %s104
    %p113 = scmp.eq.s32.totalorder %s16, 0
    %p114 = por %p112, %p113
    %p115 = scmp.ne.s32.totalorder %s103, %s104
    %p116 = scmp.eq.s32.totalorder %s17, 1
    %p117 = por %p115, %p116
    %p119 = scmp.ne.s32.totalorder %s104, %s118
    %p120 = scmp.eq.s32.totalorder %s17, 0
    %p121 = por %p119, %p120
    %s123 = sadd.s32 %s122, 1
    %p126 = scmp.eq.s32.totalorder %s11, 1
    %p127 = scmp.ne.s32.totalorder %s122, %s124
    %p128 = scmp.eq.s32.totalorder %s11, 0
    %p129 = por %p127, %p128
    %p130 = scmp.ne.s32.totalorder %s122, %s124
    %p131 = scmp.eq.s32.totalorder %s16, 1
    %p132 = por %p130, %p131
    %p133 = scmp.ne.s32.totalorder %s124, %s125
    %p134 = scmp.eq.s32.totalorder %s16, 0
    %p135 = por %p133, %p134
    %p136 = scmp.ne.s32.totalorder %s124, %s125
    %p137 = scmp.eq.s32.totalorder %s17, 1
    %p138 = por %p136, %p137
    %p140 = scmp.ne.s32.totalorder %s125, %s139
    %p141 = scmp.eq.s32.totalorder %s17, 0
    %p142 = por %p140, %p141
    %s143 = ssub.s32 %s18, %s30
    %s144 = ssub.s32 %s19, %s26
    %s145 = sor.u32 %s143, %s144
    %p146 = scmp.eq.s32.totalorder %s145, 0
    %s148 = sadd.s32 %s147, 1
    %s149 = scalar_select %p146, %s147, %s148
    %p152 = pneg %p146
    %p153 = scmp.eq.s32.totalorder %s11, 1
    %p154 = por %p152, %p153
    %p155 = scmp.ne.s32.totalorder %s147, %s150
    %p156 = scmp.eq.s32.totalorder %s11, 0
    %p157 = por %p155, %p156
    %p158 = scmp.ne.s32.totalorder %s147, %s150
    %p159 = scmp.eq.s32.totalorder %s16, 1
    %p160 = por %p158, %p159
    %p161 = scmp.ne.s32.totalorder %s150, %s151
    %p162 = scmp.eq.s32.totalorder %s16, 0
    %p163 = por %p161, %p162
    %p164 = scmp.ne.s32.totalorder %s150, %s151
    %p165 = scmp.eq.s32.totalorder %s17, 1
    %p166 = por %p164, %p165
    %p168 = scmp.ne.s32.totalorder %s151, %s167
    %p169 = scmp.eq.s32.totalorder %s17, 0
    %p170 = por %p168, %p169
    %p171 = scmp.le.s32.totalorder 1, %s11
    %p172 = scmp.lt.s32.totalorder %s11, 3
    %p173 = pnand %p171, %p172
    %p174 = pneg %p173
    // Predicated region
    $region9: #{combined_model_forward.1} parent=5 // pred_check
      _
    $region10: #{combined_model_forward.1} parent=5 // pred_check_branch
      %176 = sbr.rel (%p173) target = $region12
    $region11: #{combined_model_forward.1} parent=5 // pred_region
      %s177 = ssub.s32 %s11, 1
      // Predicated region
      $region13: #{combined_model_forward.1} parent=11 // pred_check
        %p178 = pneg %p72
      $region14: #{combined_model_forward.1} parent=11 // pred_check_branch
        %180 = sbr.rel (%p178) target = $region16
      $region15: #{combined_model_forward.1} parent=11 // pred_region
        _
      $region16: #{combined_model_forward.1} parent=11 // pred_fallthru
        _
      // Predicated region
      $region17: #{combined_model_forward.1} parent=11 // pred_check
        %p181 = pneg %p93
      $region18: #{combined_model_forward.1} parent=11 // pred_check_branch
        %183 = sbr.rel (%p181) target = $region20
      $region19: #{combined_model_forward.1} parent=11 // pred_region
        _
      $region20: #{combined_model_forward.1} parent=11 // pred_fallthru
        _
      // Predicated region
      $region21: #{combined_model_forward.1} parent=11 // pred_check
        %p184 = pneg %p114
      $region22: #{combined_model_forward.1} parent=11 // pred_check_branch
        %186 = sbr.rel (%p184) target = $region24
      $region23: #{combined_model_forward.1} parent=11 // pred_region
        _
      $region24: #{combined_model_forward.1} parent=11 // pred_fallthru
        _
      // Predicated region
      $region25: #{combined_model_forward.1} parent=11 // pred_check
        %p187 = pneg %p135
      $region26: #{combined_model_forward.1} parent=11 // pred_check_branch
        %189 = sbr.rel (%p187) target = $region28
      $region27: #{combined_model_forward.1} parent=11 // pred_region
        _
      $region28: #{combined_model_forward.1} parent=11 // pred_fallthru
        _
    $region12: #{combined_model_forward.1} parent=5 // pred_fallthru
      _
    %p190 = scmp.lt.s32.totalorder %s11, 2
    // Predicated region
    $region29: #{combined_model_forward.1} parent=5 // pred_check
      %p191 = pneg %p190
    $region30: #{combined_model_forward.1} parent=5 // pred_check_branch
      %193 = sbr.rel (%p191) target = $region32
    $region31: #{combined_model_forward.1} parent=5 // pred_region
      // Predicated region
      $region33: #{combined_model_forward.1} parent=31 // pred_check
        %p194 = pneg %p45
      $region34: #{combined_model_forward.1} parent=31 // pred_check_branch
        %196 = sbr.rel (%p194) target = $region36
      $region35: #{combined_model_forward.1} parent=31 // pred_region
        %s197 = smul.u32 2, %s19
        %p198 = scmp.lt.s32.totalorder %s18, 1
        %s199 = scalar_select %p198, %s18, 1
        %p200 = scmp.lt.s32.totalorder %s197, 1
        %s201 = scalar_select %p200, %s197, 1
        %s202 = smul.addr %s199, 2
        %s203 = sadd.s32 %s201, %s202
        %s204 = smul.addr %s203, 4
        %s205 = scalar_lea.vmem %s0, %s204
        %s206 = smul.u32 2, %s19
      $region36: #{combined_model_forward.1} parent=31 // pred_fallthru
        _
    $region32: #{combined_model_forward.1} parent=5 // pred_fallthru
      _
    %p207 = scmp.le.s32.totalorder 1, %s11
    %p208 = scmp.lt.s32.totalorder %s11, 3
    %p209 = pnand %p207, %p208
    %p210 = pneg %p209
    // Predicated region
    $region37: #{combined_model_forward.1} parent=5 // pred_check
      _
    $region38: #{combined_model_forward.1} parent=5 // pred_check_branch
      %212 = sbr.rel (%p209) target = $region40
    $region39: #{combined_model_forward.1} parent=5 // pred_region
      %s213 = ssub.s32 %s11, 1
      %s214 = smul.u32 2, %s21
      %p215 = scmp.lt.s32.totalorder %s20, 1
      %s216 = scalar_select %p215, %s20, 1
      %p217 = scmp.lt.s32.totalorder %s214, 1
      %s218 = scalar_select %p217, %s214, 1
      %s219 = smul.addr %s216, 2
      %s220 = sadd.s32 %s218, %s219
      %s221 = smul.addr %s220, 4
      %s222 = scalar_lea.vmem %s0, %s221
      %p223 = pneg %p51
      %p224 = pneg %p48
      %p225 = pneg %p72
      %p226 = pneg %p69
      %p227 = pneg %p93
      %p228 = pneg %p90
      %p229 = pneg %p114
      %p230 = pneg %p111
      %p231 = pneg %p135
      %p232 = pneg %p132
      %p233 = pneg %p163
      %p234 = pneg %p160
      %s235 = smul.u32 2, %s21
      %p236 = scmp.lt.s32.totalorder %s20, 1
      %s237 = scalar_select %p236, %s20, 1
      %p238 = scmp.lt.s32.totalorder %s235, 1
      %s239 = scalar_select %p238, %s235, 1
      %s240 = smul.addr %s237, 2
      %s241 = sadd.s32 %s239, %s240
      %s242 = smul.addr %s241, 4
      %s243 = scalar_lea.vmem %s5, %s242
      %s244 = smul.u32 2, %s21
      %p245 = scmp.lt.s32.totalorder %s20, 1
      %s246 = scalar_select %p245, %s20, 1
      %p247 = scmp.lt.s32.totalorder %s244, 1
      %s248 = scalar_select %p247, %s244, 1
      %s249 = smul.addr %s246, 2
      %s250 = sadd.s32 %s248, %s249
      %s251 = smul.addr %s250, 4
      %s252 = scalar_lea.vmem %s0, %s251
      %s253 = smul.u32 2, %s21
      %s254 = smul.u32 2, %s21
      %p255 = scmp.lt.s32.totalorder %s20, 1
      %s256 = scalar_select %p255, %s20, 1
      %p257 = scmp.lt.s32.totalorder %s254, 1
      %s258 = scalar_select %p257, %s254, 1
      %s259 = smul.addr %s256, 2
      %s260 = sadd.s32 %s258, %s259
      %s261 = smul.addr %s260, 4
      %s262 = scalar_lea.vmem %s5, %s261
      %s263 = smul.u32 2, %s21
      %v264 = vld [vmem:[%s252] sm:$0xff]
      %v265 = vld [vmem:[%s1] sm:$0xff]
      %v266 = vld [vmem:[%s2] sm:$0xff]
      %268 = vset.pattern.permute.xlu0 0
      %269 = vperm.xlu0 %268, %v266
      %v270 = vpop.permute.xlu0 %269
      %273 = vst [vmem:[#allocation1] ss:$2 sm:$0xff] %v264
      %v274 = vld.sshfl [vmem:[#allocation1] sm:$0xff pattern:$0x75316420]
      %v275 = vld.sshfl [vmem:[#allocation1 + $0x8] sm:$0xff pattern:$0x75316420]
      %vm276 = vcmask 31744
      %v278 = vsel %vm276, %v265, 0
      %vm280 = vcmask 1043456
      %v281 = vsel %vm280, %v274, 0
      %v283 = vsel %vm280, %v275, 0
      %285 = vmatpush.msra.mxu0 0.0
      %286 = vmatpush.msra.mxu0 0.0
      %287 = vmatpush.msra.mxu0 0.0
      %288 = vmatpush.msra.mxu0 0.0
      %289 = vmatpush.msra.mxu0 0.0
      %290 = vmatpush.msra.mxu0 0.0
      %291 = vmatpush.msra.mxu0 0.0
      %292 = vmatpush.msra.mxu0 0.0
      %293 = vmatpush.msra.mxu0 0.0
      %294 = vmatpush.msra.mxu0 0.0
      %295 = vmatpush.msra.mxu0 0.0
      %296 = vmatpush.msra.mxu0 0.0
      %297 = vmatpush.msra.mxu0 0.0
      %298 = vmatpush.msra.mxu0 0.0
      %299 = vmatpush.msra.mxu0 0.0
      %300 = vmatpush.msra.mxu0 %v281
      %301 = vmatmul.f32.gmra.mxu0 %v278
      %v302 = vpop.f32.mrf.mxu0
      %v303 = vadd.f32 %v270, %v302
      %304 = vdwg.mxu0
      %305 = vmatpush.msra.mxu0 0.0
      %306 = vmatpush.msra.mxu0 0.0
      %307 = vmatpush.msra.mxu0 0.0
      %308 = vmatpush.msra.mxu0 0.0
      %309 = vmatpush.msra.mxu0 0.0
      %310 = vmatpush.msra.mxu0 0.0
      %311 = vmatpush.msra.mxu0 0.0
      %312 = vmatpush.msra.mxu0 0.0
      %313 = vmatpush.msra.mxu0 0.0
      %314 = vmatpush.msra.mxu0 0.0
      %315 = vmatpush.msra.mxu0 0.0
      %316 = vmatpush.msra.mxu0 0.0
      %317 = vmatpush.msra.mxu0 0.0
      %318 = vmatpush.msra.mxu0 0.0
      %319 = vmatpush.msra.mxu0 0.0
      %320 = vmatpush.msra.mxu0 %v283
      %321 = vmatmul.f32.gmra.mxu0 %v278
      %v322 = vpop.f32.mrf.mxu0
      %v323 = vadd.f32 %v270, %v322
      %324 = vdwg.mxu0
      %v325 = vmax.f32 %v303, 0.0
      %v326 = vmax.f32 %v323, 0.0
      %v327 = vld [vmem:[%s3] sm:$0x7]
      %v328 = vld [vmem:[%s4] sm:$0x7]
      %330 = vset.pattern.permute.xlu0 0
      %331 = vperm.xlu0 %330, %v328
      %v332 = vpop.permute.xlu0 %331
      %vm334 = vcmask 64512
      %v336 = vsel %vm334, %v327, 0
      %338 = vmatpush.msra.mxu0 0.0
      %339 = vmatpush.msra.mxu0 0.0
      %340 = vmatpush.msra.mxu0 0.0
      %341 = vmatpush.msra.mxu0 0.0
      %342 = vmatpush.msra.mxu0 0.0
      %343 = vmatpush.msra.mxu0 0.0
      %344 = vmatpush.msra.mxu0 0.0
      %345 = vmatpush.msra.mxu0 0.0
      %346 = vmatpush.msra.mxu0 0.0
      %347 = vmatpush.msra.mxu0 0.0
      %348 = vmatpush.msra.mxu0 0.0
      %349 = vmatpush.msra.mxu0 0.0
      %350 = vmatpush.msra.mxu0 0.0
      %351 = vmatpush.msra.mxu0 0.0
      %352 = vmatpush.msra.mxu0 0.0
      %353 = vmatpush.msra.mxu0 %v325
      %354 = vmatmul.f32.gmra.mxu0 %v336
      %v355 = vpop.f32.mrf.mxu0
      %v356 = vadd.f32 %v332, %v355
      %357 = vdwg.mxu0
      %358 = vmatpush.msra.mxu0 0.0
      %359 = vmatpush.msra.mxu0 0.0
      %360 = vmatpush.msra.mxu0 0.0
      %361 = vmatpush.msra.mxu0 0.0
      %362 = vmatpush.msra.mxu0 0.0
      %363 = vmatpush.msra.mxu0 0.0
      %364 = vmatpush.msra.mxu0 0.0
      %365 = vmatpush.msra.mxu0 0.0
      %366 = vmatpush.msra.mxu0 0.0
      %367 = vmatpush.msra.mxu0 0.0
      %368 = vmatpush.msra.mxu0 0.0
      %369 = vmatpush.msra.mxu0 0.0
      %370 = vmatpush.msra.mxu0 0.0
      %371 = vmatpush.msra.mxu0 0.0
      %372 = vmatpush.msra.mxu0 0.0
      %373 = vmatpush.msra.mxu0 %v326
      %374 = vmatmul.f32.gmra.mxu0 %v336
      %v375 = vpop.f32.mrf.mxu0
      %v376 = vadd.f32 %v332, %v375
      %377 = vdwg.mxu0
      %v380 = vrot.slane %v376, 4
      %v381 = vsel %vm280, %v356, %v380
      %383 = vst [vmem:[%s262] sm:$0x77] %v381
      %s384 = smul.u32 2, %s21
      %p385 = scmp.lt.s32.totalorder %s20, 1
      %s386 = scalar_select %p385, %s20, 1
      %p387 = scmp.lt.s32.totalorder %s384, 1
      %s388 = scalar_select %p387, %s384, 1
      %s389 = smul.addr %s386, 2
      %s390 = sadd.s32 %s388, %s389
      %s391 = smul.addr %s390, 4
      %s392 = scalar_lea.vmem %s5, %s391
      // Predicated region
      $region41: #{combined_model_forward.1} parent=39 // pred_check
        %p393 = pneg %p160
      $region42: #{combined_model_forward.1} parent=39 // pred_check_branch
        %395 = sbr.rel (%p393) target = $region44
      $region43: #{combined_model_forward.1} parent=39 // pred_region
        %s396 = smul.u32 2, %s21
      $region44: #{combined_model_forward.1} parent=39 // pred_fallthru
        _
    $region40: #{combined_model_forward.1} parent=5 // pred_fallthru
      _
    %p397 = scmp.le.s32.totalorder 2, %s11
    // Predicated region
    $region45: #{combined_model_forward.1} parent=5 // pred_check
      %p398 = pneg %p397
    $region46: #{combined_model_forward.1} parent=5 // pred_check_branch
      %400 = sbr.rel (%p398) target = $region48
    $region47: #{combined_model_forward.1} parent=5 // pred_region
      %s401 = ssub.s32 %s11, 2
      // Predicated region
      $region49: #{combined_model_forward.1} parent=47 // pred_check
        %p402 = pneg %p166
      $region50: #{combined_model_forward.1} parent=47 // pred_check_branch
        %404 = sbr.rel (%p402) target = $region52
      $region51: #{combined_model_forward.1} parent=47 // pred_region
        %s405 = smul.u32 2, %s23
        %p406 = scmp.lt.s32.totalorder %s22, 1
        %s407 = scalar_select %p406, %s22, 1
        %p408 = scmp.lt.s32.totalorder %s405, 1
        %s409 = scalar_select %p408, %s405, 1
        %s410 = smul.addr %s407, 2
        %s411 = sadd.s32 %s409, %s410
        %s412 = smul.addr %s411, 4
        %s413 = scalar_lea.vmem %s5, %s412
      $region52: #{combined_model_forward.1} parent=47 // pred_fallthru
        _
    $region48: #{combined_model_forward.1} parent=5 // pred_fallthru
      _
  $region6: #{combined_model_forward.1} parent=0 // loop_footer
    %s15 = sadd.s32 1, %s11
  $region7: #{combined_model_forward.1} parent=0 // loop_footer_branch
    %10 = sbr.rel target = $region3
  $region8: #{combined_model_forward.1} parent=0 // loop_exit
    _

</llo_original>
